<compile_context>
chip_gen: v7x
topology: tpu7x:2x2x1
jax: 0.10.0
libtpu: 0.0.40
codegen_flags: <defaults>
</compile_context>

<pallas_src>
import jax
import jax.numpy as jnp
from jax.experimental import pallas as pl
from jax.experimental.pallas import tpu as pltpu

BN_EPS = 1e-5
NUM_CLASSES = 11
PADDED_CLASSES = 128       # lane-dense class width (next multiple of 128 >= 11)
NEG_BIG = -1e30            # f32 bias for padded classes; exp() underflows to exactly 0


def _round_up(x, m):
    return ((x + m - 1) // m) * m


# --------------------------------------------------------------------------- #
# Kernel
# --------------------------------------------------------------------------- #
def _classifier_kernel(x_ref, wa_ref, ba_ref, w2_ref, b2_ref, out_ref, h_acc):
    k = pl.program_id(1)

    @pl.when(k == 0)
    def _():
        h_acc[...] = jnp.zeros_like(h_acc)

    # Fused (PCA-center + PCA-project + Linear1 + BatchNorm) partial matmul over
    # this F-chunk.  x is cast to the weight dtype in-kernel (VPU slot, free).
    h_acc[...] += jnp.dot(x_ref[...].astype(wa_ref.dtype), wa_ref[...],
                          preferred_element_type=jnp.float32)

    @pl.when(k == pl.num_programs(1) - 1)
    def _():
        h = jnp.maximum(h_acc[...] + ba_ref[...], 0.0)
        logits = jnp.dot(h.astype(w2_ref.dtype), w2_ref[...],
                         preferred_element_type=jnp.float32) + b2_ref[...]
        # Softmax over the lane-dense padded class dim.  Padded lanes carry a
        # finite -1e30 f32 bias -> exp() is exactly 0, normalisation untouched.
        m = jnp.max(logits, axis=1, keepdims=True)
        e = jnp.exp(logits - m)
        s = jnp.sum(e, axis=1, keepdims=True)
        out_ref[...] = e / s            # exact normalisation: rows sum to 1


# --------------------------------------------------------------------------- #
# Offline parameter fusion (run once, outside the kernel)
# --------------------------------------------------------------------------- #
def fold_params(p, *, padded_classes=PADDED_CLASSES, param_dtype=jnp.bfloat16):
    """Fold PCA mean/projection + Linear1 + BatchNorm into one matmul; pad the
    hidden dim to a multiple of 128, the feature dim to a multiple of 256 and
    the class dim to `padded_classes` so every tile is lane/sublane dense.
    Weights may be narrowed (bf16 default); biases stay f32."""
    f32 = jnp.float32
    scale = p["bn_gamma"].astype(f32) * jax.lax.rsqrt(p["bn_var"].astype(f32) + BN_EPS)
    w1s = p["w1"].astype(f32) * scale                                    # (K, H)
    b1s = (p["b1"].astype(f32) - p["bn_mean"].astype(f32)) * scale + p["bn_beta"].astype(f32)

    w_a = p["components_T"].astype(f32) @ w1s                            # (F, H)
    b_a = b1s - p["pca_mean"].astype(f32) @ w_a                          # (1, H)

    F, H = w_a.shape
    H_pad = _round_up(H, 128)
    F_pad = _round_up(F, 256)
    # Zero-padded rows/cols: extra x cols are zero, extra H lanes give relu(0)=0
    # and have zero W2 rows -> exact no-op on the real outputs.
    w_a_p = jnp.zeros((F_pad, H_pad), f32).at[:F, :H].set(w_a)
    b_a_p = jnp.zeros((1, H_pad), f32).at[:, :H].set(b_a)

    h_dim, c = p["w2"].shape
    w2p = jnp.zeros((H_pad, padded_classes), f32).at[:h_dim, :c].set(p["w2"].astype(f32))
    b2p = jnp.full((1, padded_classes), NEG_BIG, f32).at[:, :c].set(p["b2"].astype(f32))

    # NEG_BIG must stay f32 (it becomes -inf in bf16 and would NaN the softmax).
    assert b_a_p.dtype == jnp.float32 and b2p.dtype == jnp.float32
    return w_a_p.astype(param_dtype), b_a_p, w2p.astype(param_dtype), b2p


# --------------------------------------------------------------------------- #
# Wrapper
# --------------------------------------------------------------------------- #
def _batch_tiling(B):
    """Returns (B_pad, tile_b).  Pads rather than shrinking to tiny tiles, and
    gives the 'parallel' batch axis >= 2 steps whenever B > 8 so v7x megacore
    has work for both TensorCores."""
    B8 = _round_up(B, 8)
    if B8 <= 8:
        return 8, 8
    if B8 <= 512:
        tile_b = _round_up(pl.cdiv(B8, 2), 8)
        return _round_up(B8, tile_b), tile_b
    tile_b = 256
    return _round_up(B8, tile_b), tile_b


@jax.jit
def food11k_pca_classifier(x, w_a, b_a, w2, b2):
    """x: (B, F_raw). Returns softmax probabilities (B, NUM_CLASSES) in f32."""
    B, F_in = x.shape
    F_pad, H_pad = w_a.shape
    CP = w2.shape[1]

    # Pad the feature dim to the folded weights' padded F (zero cols x zero rows).
    if F_in != F_pad:
        x = jnp.pad(x, ((0, 0), (0, F_pad - F_in)))

    B_pad, tile_b = _batch_tiling(B)
    if B_pad != B:
        x = jnp.pad(x, ((0, B_pad - B), (0, 0)))
    b_steps = B_pad // tile_b

    w_item = jnp.dtype(w_a.dtype).itemsize
    x_item = jnp.dtype(x.dtype).itemsize

    # Chunk the contraction over F when the resident folded weight would not
    # comfortably fit VMEM (v7x has only 64 MiB per TensorCore).
    full_weight_bytes = (F_pad * H_pad + H_pad * CP) * w_item + (H_pad + CP) * 4
    if full_weight_bytes > (28 << 20):
        tile_f = next(t for t in (2048, 1024, 512, 256) if F_pad % t == 0)
    else:
        tile_f = F_pad
    f_steps = F_pad // tile_f

    # VMEM plan: actual buffer counts + h accumulator + logits/exp temporaries.
    wa_bufs = 2 if f_steps > 1 else 1
    vmem_needed = (
        wa_bufs * tile_f * H_pad * w_item            # W_a (chunk) buffers
        + H_pad * CP * w_item + (H_pad + CP) * 4     # W2 + biases (single-buffered)
        + 2 * tile_b * tile_f * x_item               # double-buffered x tile
        + 2 * tile_b * CP * 4                        # double-buffered out tile
        + tile_b * H_pad * 4                         # h accumulator scratch
        + tile_b * (H_pad + 3 * CP) * 4              # h / logits / exp temporaries
    )
    cp_kwargs = dict(dimension_semantics=("parallel", "arbitrary"))
    if vmem_needed > (12 << 20):
        try:
            phys = pltpu.get_tpu_info().vmem_capacity_bytes
        except Exception:  # interpret mode / unknown target: assume v7x per-core
            phys = 64 << 20
        cap = max(phys - (8 << 20), 16 << 20)
        cp_kwargs["vmem_limit_bytes"] = min(int(1.25 * vmem_needed) + (4 << 20), cap)

    # Constant-index operands are single-buffered unconditionally; only the
    # F-chunked W_a (when chunked) and the x/out tiles use the default 2 buffers.
    if f_steps > 1:
        wa_spec = pl.BlockSpec((tile_f, H_pad), lambda i, k: (k, 0))
    else:
        wa_spec = pl.BlockSpec((tile_f, H_pad), lambda i, k: (0, 0),
                               pipeline_mode=pl.Buffered(1))

    out = pl.pallas_call(
        _classifier_kernel,
        out_shape=jax.ShapeDtypeStruct((B_pad, CP), jnp.float32),
        grid_spec=pltpu.PrefetchScalarGridSpec(
            num_scalar_prefetch=0,
            grid=(b_steps, f_steps),
            in_specs=[
                pl.BlockSpec((tile_b, tile_f), lambda i, k: (i, k)),    # x
                wa_spec,                                                # fused W_a
                pl.BlockSpec((1, H_pad), lambda i, k: (0, 0),
                             pipeline_mode=pl.Buffered(1)),             # fused bias
                pl.BlockSpec((H_pad, CP), lambda i, k: (0, 0),
                             pipeline_mode=pl.Buffered(1)),             # padded W2
                pl.BlockSpec((1, CP), lambda i, k: (0, 0),
                             pipeline_mode=pl.Buffered(1)),             # padded b2
            ],
            out_specs=pl.BlockSpec((tile_b, CP), lambda i, k: (i, 0)),
            scratch_shapes=[pltpu.VMEM((tile_b, H_pad), jnp.float32)],
        ),
        compiler_params=pltpu.CompilerParams(**cp_kwargs),
    )(x, w_a, b_a, w2, b2)

    # Drop batch padding and the lane padding of the class dim.
    return out[:B, :NUM_CLASSES]


# --------------------------------------------------------------------------- #
# Test harness
# --------------------------------------------------------------------------- #
def init_raw_params(key, F, K, H, C):
    ks = jax.random.split(key, 8)
    return {
        "pca_mean": jax.random.normal(ks[0], (1, F), jnp.float32) * 0.1,
        "components_T": jax.random.normal(ks[1], (F, K), jnp.float32) / jnp.sqrt(F),
        "w1": jax.random.normal(ks[2], (K, H), jnp.float32) / jnp.sqrt(K),
        "b1": jax.random.normal(ks[3], (1, H), jnp.float32) * 0.01,
        "bn_gamma": jnp.ones((1, H), jnp.float32),
        "bn_beta": jnp.zeros((1, H), jnp.float32),
        "bn_mean": jax.random.normal(ks[4], (1, H), jnp.float32) * 0.05,
        "bn_var": jnp.abs(jax.random.normal(ks[5], (1, H), jnp.float32)) + 0.5,
        "w2": jax.random.normal(ks[6], (H, C), jnp.float32) / jnp.sqrt(H),
        "b2": jax.random.normal(ks[7], (1, C), jnp.float32) * 0.01,
    }


def reference(x, p):
    xc = x - p["pca_mean"]
    z = xc @ p["components_T"]
    h = z @ p["w1"] + p["b1"]
    h = (h - p["bn_mean"]) / jnp.sqrt(p["bn_var"] + BN_EPS) * p["bn_gamma"] + p["bn_beta"]
    h = jnp.maximum(h, 0.0)
    logits = h @ p["w2"] + p["b2"]
    return jax.nn.softmax(logits, axis=1)


if __name__ == "__main__":
    # Small shapes (scaled down from production F, K=3000, H=1000, C=11).
    B, F, K, H = 16, 256, 128, 128

    key = jax.random.PRNGKey(0)
    kx, kp = jax.random.split(key)
    x = jax.random.normal(kx, (B, F), jnp.float32)
    raw = init_raw_params(kp, F, K, H, NUM_CLASSES)

    # TODO(synk): sklearn PCA.fit has no Pallas equivalent; only the transform
    # (center + project) is implemented, folded into the first matmul.
    ref = reference(x, raw)

    # f32 weights: tight numerical check against the unfused reference.
    out_f32 = food11k_pca_classifier(x, *fold_params(raw, param_dtype=jnp.float32))
    out_f32 = jax.block_until_ready(out_f32)
    assert out_f32.shape == (B, NUM_CLASSES)
    err_f32 = float(jnp.max(jnp.abs(out_f32 - ref)))
    assert jnp.allclose(out_f32, ref, atol=2e-3, rtol=2e-3), f"f32 max abs err {err_f32}"
    assert jnp.allclose(jnp.sum(out_f32, axis=1), 1.0, atol=1e-4)

    # Default bf16 weights (native MXU dtype): looser element tolerance, but the
    # rows must still sum to 1 exactly up to f32 rounding (exact division).
    out_bf16 = food11k_pca_classifier(x, *fold_params(raw))
    out_bf16 = jax.block_until_ready(out_bf16)
    err_bf16 = float(jnp.max(jnp.abs(out_bf16 - ref)))
    assert jnp.allclose(out_bf16, ref, atol=3e-2, rtol=3e-2), f"bf16 max abs err {err_bf16}"
    assert jnp.allclose(jnp.sum(out_bf16, axis=1), 1.0, atol=1e-4)

    print("KERNEL_OK")
</pallas_src>

<mosaic_0001>
module attributes {stable_mosaic.version = 11 : i64} {
  func.func @_classifier_kernel(%arg0: i32, %arg1: i32, %arg2: memref<8x256xf32, #tpu.memory_space<vmem>>, %arg3: memref<256x128xf32, #tpu.memory_space<vmem>>, %arg4: memref<1x128xf32, #tpu.memory_space<vmem>>, %arg5: memref<128x128xf32, #tpu.memory_space<vmem>>, %arg6: memref<1x128xf32, #tpu.memory_space<vmem>>, %arg7: memref<8x128xf32, #tpu.memory_space<vmem>>, %arg8: memref<8x128xf32, #tpu.memory_space<vmem>>) attributes {dimension_semantics = [#tpu.dimension_semantics<parallel>, #tpu.dimension_semantics<arbitrary>], iteration_bounds = array<i64: 2, 1>, scalar_prefetch = 0 : i64, scratch_operands = 1 : i64, tpu.core_type = #tpu.core_type<tc>, window_params = [{transform_indices = @transform_0, window_bounds = array<i64: 8, 256>}, {pipeline_mode = #tpu.pipeline_mode<synchronous>, transform_indices = @transform_1, window_bounds = array<i64: 256, 128>}, {pipeline_mode = #tpu.pipeline_mode<synchronous>, transform_indices = @transform_2, window_bounds = array<i64: 1, 128>}, {pipeline_mode = #tpu.pipeline_mode<synchronous>, transform_indices = @transform_3, window_bounds = array<i64: 128, 128>}, {pipeline_mode = #tpu.pipeline_mode<synchronous>, transform_indices = @transform_4, window_bounds = array<i64: 1, 128>}, {transform_indices = @transform_5, window_bounds = array<i64: 8, 128>}]} {
    %c0_i32 = arith.constant 0 : i32
    %0 = arith.cmpi eq, %arg1, %c0_i32 : i32
    %1 = arith.extui %0 : i1 to i32
    %c0_i32_0 = arith.constant 0 : i32
    %2 = arith.cmpi ne, %1, %c0_i32_0 : i32
    scf.if %2 {
      %cst_10 = arith.constant 0.000000e+00 : f32
      %12 = vector.broadcast %cst_10 : f32 to vector<8x128xf32>
      %c0_11 = arith.constant 0 : index
      %c0_12 = arith.constant 0 : index
      %13 = vector.load %arg8[%c0_11, %c0_12] : memref<8x128xf32, #tpu.memory_space<vmem>>, vector<8x128xf32>
      tpu.vector_store %arg8[%c0_11, %c0_12], %12 {strides = array<i32>} : memref<8x128xf32, #tpu.memory_space<vmem>>, vector<8x128xf32>,
    } else {
    }
    %c0 = arith.constant 0 : index
    %c0_1 = arith.constant 0 : index
    %3 = vector.load %arg8[%c0, %c0_1] : memref<8x128xf32, #tpu.memory_space<vmem>>, vector<8x128xf32>
    %c0_2 = arith.constant 0 : index
    %c0_3 = arith.constant 0 : index
    %4 = vector.load %arg2[%c0_2, %c0_3] : memref<8x256xf32, #tpu.memory_space<vmem>>, vector<8x256xf32>
    %c0_4 = arith.constant 0 : index
    %c0_5 = arith.constant 0 : index
    %5 = vector.load %arg3[%c0_4, %c0_5] : memref<256x128xf32, #tpu.memory_space<vmem>>, vector<256x128xf32>
    %cst = arith.constant dense<0.000000e+00> : vector<8x128xf32>
    %6 = tpu.matmul %4, %5, %cst {dimension_numbers = #tpu.dot_dimension_numbers<[1], [0], [0], [1], [0, 0, 1, 1], [], []>} : vector<8x256xf32>, vector<256x128xf32>, vector<8x128xf32> -> vector<8x128xf32>
    %7 = arith.addf %3, %6 : vector<8x128xf32>
    %c0_6 = arith.constant 0 : index
    %c0_7 = arith.constant 0 : index
    %8 = vector.load %arg8[%c0_6, %c0_7] : memref<8x128xf32, #tpu.memory_space<vmem>>, vector<8x128xf32>
    tpu.vector_store %arg8[%c0_6, %c0_7], %7 {strides = array<i32>} : memref<8x128xf32, #tpu.memory_space<vmem>>, vector<8x128xf32>,
    %c0_i32_8 = arith.constant 0 : i32
    %9 = arith.cmpi eq, %arg1, %c0_i32_8 : i32
    %10 = arith.extui %9 : i1 to i32
    %c0_i32_9 = arith.constant 0 : i32
    %11 = arith.cmpi ne, %10, %c0_i32_9 : i32
    scf.if %11 {
      %c0_10 = arith.constant 0 : index
      %c0_11 = arith.constant 0 : index
      %12 = vector.load %arg8[%c0_10, %c0_11] : memref<8x128xf32, #tpu.memory_space<vmem>>, vector<8x128xf32>
      %c0_12 = arith.constant 0 : index
      %c0_13 = arith.constant 0 : index
      %13 = vector.load %arg4[%c0_12, %c0_13] : memref<1x128xf32, #tpu.memory_space<vmem>>, vector<1x128xf32>
      %14 = vector.broadcast %13 : vector<1x128xf32> to vector<8x128xf32>
      %15 = arith.addf %12, %14 : vector<8x128xf32>
      %cst_14 = arith.constant 0.000000e+00 : f32
      %16 = vector.broadcast %cst_14 : f32 to vector<8x128xf32>
      %17 = arith.maximumf %15, %16 : vector<8x128xf32>
      %c0_15 = arith.constant 0 : index
      %c0_16 = arith.constant 0 : index
      %18 = vector.load %arg5[%c0_15, %c0_16] : memref<128x128xf32, #tpu.memory_space<vmem>>, vector<128x128xf32>
      %cst_17 = arith.constant dense<0.000000e+00> : vector<8x128xf32>
      %19 = tpu.matmul %17, %18, %cst_17 {dimension_numbers = #tpu.dot_dimension_numbers<[1], [0], [0], [1], [0, 0, 1, 1], [], []>} : vector<8x128xf32>, vector<128x128xf32>, vector<8x128xf32> -> vector<8x128xf32>
      %c0_18 = arith.constant 0 : index
      %c0_19 = arith.constant 0 : index
      %20 = vector.load %arg6[%c0_18, %c0_19] : memref<1x128xf32, #tpu.memory_space<vmem>>, vector<1x128xf32>
      %21 = vector.broadcast %20 : vector<1x128xf32> to vector<8x128xf32>
      %22 = arith.addf %19, %21 : vector<8x128xf32>
      %cst_20 = arith.constant dense<0xFF800000> : vector<8xf32>
      %23 = vector.multi_reduction <maximumf>, %22, %cst_20 [1] : vector<8x128xf32> to vector<8xf32>
      %24 = vector.shape_cast %23 : vector<8xf32> to vector<8x1xf32>
      %25 = vector.broadcast %24 : vector<8x1xf32> to vector<8x128xf32>
      %26 = arith.subf %22, %25 : vector<8x128xf32>
      %27 = math.exp %26 : vector<8x128xf32>
      %cst_21 = arith.constant dense<0.000000e+00> : vector<8xf32>
      %28 = vector.multi_reduction <add>, %27, %cst_21 [1] : vector<8x128xf32> to vector<8xf32>
      %29 = vector.shape_cast %28 : vector<8xf32> to vector<8x1xf32>
      %30 = vector.broadcast %29 : vector<8x1xf32> to vector<8x128xf32>
      %31 = arith.divf %27, %30 : vector<8x128xf32>
      %c0_22 = arith.constant 0 : index
      %c0_23 = arith.constant 0 : index
      %32 = vector.load %arg7[%c0_22, %c0_23] : memref<8x128xf32, #tpu.memory_space<vmem>>, vector<8x128xf32>
      tpu.vector_store %arg7[%c0_22, %c0_23], %31 {strides = array<i32>} : memref<8x128xf32, #tpu.memory_space<vmem>>, vector<8x128xf32>,
    } else {
    }
    return
  }
  func.func @transform_0(%arg0: i32, %arg1: i32) -> (i32, i32) {
    %c0_i32 = arith.constant 0 : i32
    return %arg0, %arg1 : i32, i32
  }
  func.func @transform_1(%arg0: i32, %arg1: i32) -> (i32, i32) {
    %c0_i32 = arith.constant 0 : i32
    %c0_i32_0 = arith.constant 0 : i32
    %c0_i32_1 = arith.constant 0 : i32
    return %c0_i32, %c0_i32_0 : i32, i32
  }
  func.func @transform_2(%arg0: i32, %arg1: i32) -> (i32, i32) {
    %c0_i32 = arith.constant 0 : i32
    %c0_i32_0 = arith.constant 0 : i32
    %c0_i32_1 = arith.constant 0 : i32
    return %c0_i32, %c0_i32_0 : i32, i32
  }
  func.func @transform_3(%arg0: i32, %arg1: i32) -> (i32, i32) {
    %c0_i32 = arith.constant 0 : i32
    %c0_i32_0 = arith.constant 0 : i32
    %c0_i32_1 = arith.constant 0 : i32
    return %c0_i32, %c0_i32_0 : i32, i32
  }
  func.func @transform_4(%arg0: i32, %arg1: i32) -> (i32, i32) {
    %c0_i32 = arith.constant 0 : i32
    %c0_i32_0 = arith.constant 0 : i32
    %c0_i32_1 = arith.constant 0 : i32
    return %c0_i32, %c0_i32_0 : i32, i32
  }
  func.func @transform_5(%arg0: i32, %arg1: i32) -> (i32, i32) {
    %c0_i32 = arith.constant 0 : i32
    %c0_i32_0 = arith.constant 0 : i32
    return %arg0, %c0_i32 : i32, i32
  }
}

</mosaic_0001>

<llo_original>
// kernel: food11k_pca_classifier.1
$region0: #{food11k_pca_classifier.1}
  #allocation0 [shape = 'u32[]', space=smem, size = 0x4, offset = 0x4, fixed_abs, tag = 'smem constant byte address 0x4 - core index']
  #allocation1 [shape = 'u32[144,128]{1,0:T(1,128)}', space=vmem, size = 0x12000, scoped, tag = 'internal scratch']
  #allocation2 [shape = 'f32[8,128]{1,0:T(8,128)}', space=vmem, size = 0x1000, scoped, tag = 'scratch operand']
  %s0 = inlined_call_operand.hbm [shape: f32[16,256], index: 0, kind: input, shape index: {}]
  %s1 = inlined_call_operand.hbm [shape: f32[256,128], index: 1, kind: input, shape index: {}]
  %s2 = inlined_call_operand.vmem [shape: f32[1,128], index: 2, kind: input, shape index: {}]
  %s3 = inlined_call_operand.hbm [shape: f32[128,128], index: 3, kind: input, shape index: {}]
  %s4 = inlined_call_operand.vmem [shape: f32[1,128], index: 4, kind: input, shape index: {}]
  %s5 = inlined_call_operand.hbm [shape: f32[16,128], index: 5, kind: output, shape index: {}]
  %s6 = sld [smem:[#allocation0]]
  $region73: #{food11k_pca_classifier.1} parent=0
    _
  %s8 = ssub.s32 1, %s6
  %s9 = scalar_select 0, %s8, %s6
  $region1: #{food11k_pca_classifier.1} parent=0
    #allocation3 [shape = 'u8[16384]{0}', space=vmem, size = 0x4000, scoped, tag = 'input window, operand 0']
    #allocation4 [shape = 's32[2]{0}', space=sflag, size = 0x8, scoped, tag = 'scoped memory for food11k_pca_classifier.1']
    #allocation5 [shape = 's32[2]{0}', space=sflag, size = 0x8, scoped, tag = 'scoped memory for food11k_pca_classifier.1']
    #allocation6 [shape = 'u8[131072]{0}', space=vmem, size = 0x20000, scoped, tag = 'input window, operand 1, single buffered']
    #allocation7 [shape = 's32[1]{0}', space=sflag, size = 0x4, scoped, tag = 'scoped memory for food11k_pca_classifier.1']
    #allocation8 [shape = 'u8[65536]{0}', space=vmem, size = 0x10000, scoped, tag = 'input window, operand 3, single buffered']
    #allocation9 [shape = 'u8[8192]{0}', space=vmem, size = 0x2000, scoped, tag = 'output window, operand 0']
    %10 = vsyncpa [#allocation4], 0
    %s11 = scalar_lea.sflag [#allocation4], 1
    %12 = vsyncpa %s11, 0
    %13 = vsyncpa [#allocation7], 0
    %14 = vsyncpa [#allocation5], 0
    %s15 = scalar_lea.sflag [#allocation5], 1
    %16 = vsyncpa %s15, 0
    loop: start=0, step=1, limit=4
    $region2: #{food11k_pca_classifier.1} parent=1 // loop_pre_header
      _
    $region3: #{food11k_pca_classifier.1} parent=1 // loop_header
      %s18 = sphi 0, %s22
      %p19 = scmp.ge.s32.totalorder %s18, 4
      %s25 = sphi 0, %s37
      %s26 = sphi 0, %s33
      %s27 = sphi 0, %s25
      %s28 = sphi 0, %s26
      %s29 = sphi 0, %s27
      %s30 = sphi 0, %s28
      %s42 = sphi 0, %s44
      %s45 = sphi 0, %s42
      %s46 = sphi 0, %s45
      %s62 = sphi 0, %s46
      %s66 = sphi 0, %s66
      %s68 = sphi 0, %s66
      %s69 = sphi 0, %s68
      %s83 = sphi 0, %s69
      %s87 = sphi 0, %s87
      %s89 = sphi 0, %s87
      %s90 = sphi 0, %s89
      %s104 = sphi 0, %s90
      %s108 = sphi 0, %s108
      %s110 = sphi 0, %s108
      %s111 = sphi 0, %s110
      %s125 = sphi 0, %s111
      %s129 = sphi 0, %s129
      %s131 = sphi 0, %s129
      %s132 = sphi 0, %s131
      %s146 = sphi 0, %s132
      %s152 = sphi 0, %s154
      %s155 = sphi 0, %s152
      %s156 = sphi 0, %s155
      %s172 = sphi 0, %s156
    $region4: #{food11k_pca_classifier.1} parent=1 // loop_header_branch
      %21 = sbr.rel (%p19) target = $region8
    $region5: #{food11k_pca_classifier.1} parent=1 // loop_body
      %s23 = ssub.s32 %s18, 1
      %s24 = ssub.s32 %s18, 2
      %s31 = sadd.s32 1, %s26
      %p32 = scmp.ge.s32.totalorder %s31, 1
      %s33 = scalar_select %p32, 0, %s31
      %s34 = sadd.s32 1, %s25
      %s35 = scalar_select %p32, %s34, %s25
      %p36 = scmp.ge.s32.totalorder %s35, 2
      %s37 = scalar_select %p36, 0, %s35
      %s38 = ssub.s32 %s25, %s37
      %s39 = ssub.s32 %s26, %s33
      %s40 = sor.u32 %s38, %s39
      %p41 = scmp.eq.s32.totalorder %s40, 0
      %s43 = sadd.s32 %s42, 1
      %s44 = scalar_select %p41, %s42, %s43
      %p47 = pneg %p41
      %p48 = scmp.eq.s32.totalorder %s18, 1
      %p49 = por %p47, %p48
      %p50 = scmp.ne.s32.totalorder %s42, %s45
      %p51 = scmp.eq.s32.totalorder %s18, 0
      %p52 = por %p50, %p51
      %p53 = scmp.ne.s32.totalorder %s42, %s45
      %p54 = scmp.eq.s32.totalorder %s23, 1
      %p55 = por %p53, %p54
      %p56 = scmp.ne.s32.totalorder %s45, %s46
      %p57 = scmp.eq.s32.totalorder %s23, 0
      %p58 = por %p56, %p57
      %p59 = scmp.ne.s32.totalorder %s45, %s46
      %p60 = scmp.eq.s32.totalorder %s24, 1
      %p61 = por %p59, %p60
      %p63 = scmp.ne.s32.totalorder %s46, %s62
      %p64 = scmp.eq.s32.totalorder %s24, 0
      %p65 = por %p63, %p64
      %s67 = sadd.s32 %s66, 1
      %p70 = scmp.eq.s32.totalorder %s18, 1
      %p71 = scmp.ne.s32.totalorder %s66, %s68
      %p72 = scmp.eq.s32.totalorder %s18, 0
      %p73 = por %p71, %p72
      %p74 = scmp.ne.s32.totalorder %s66, %s68
      %p75 = scmp.eq.s32.totalorder %s23, 1
      %p76 = por %p74, %p75
      %p77 = scmp.ne.s32.totalorder %s68, %s69
      %p78 = scmp.eq.s32.totalorder %s23, 0
      %p79 = por %p77, %p78
      %p80 = scmp.ne.s32.totalorder %s68, %s69
      %p81 = scmp.eq.s32.totalorder %s24, 1
      %p82 = por %p80, %p81
      %p84 = scmp.ne.s32.totalorder %s69, %s83
      %p85 = scmp.eq.s32.totalorder %s24, 0
      %p86 = por %p84, %p85
      %s88 = sadd.s32 %s87, 1
      %p91 = scmp.eq.s32.totalorder %s18, 1
      %p92 = scmp.ne.s32.totalorder %s87, %s89
      %p93 = scmp.eq.s32.totalorder %s18, 0
      %p94 = por %p92, %p93
      %p95 = scmp.ne.s32.totalorder %s87, %s89
      %p96 = scmp.eq.s32.totalorder %s23, 1
      %p97 = por %p95, %p96
      %p98 = scmp.ne.s32.totalorder %s89, %s90
      %p99 = scmp.eq.s32.totalorder %s23, 0
      %p100 = por %p98, %p99
      %p101 = scmp.ne.s32.totalorder %s89, %s90
      %p102 = scmp.eq.s32.totalorder %s24, 1
      %p103 = por %p101, %p102
      %p105 = scmp.ne.s32.totalorder %s90, %s104
      %p106 = scmp.eq.s32.totalorder %s24, 0
      %p107 = por %p105, %p106
      %s109 = sadd.s32 %s108, 1
      %p112 = scmp.eq.s32.totalorder %s18, 1
      %p113 = scmp.ne.s32.totalorder %s108, %s110
      %p114 = scmp.eq.s32.totalorder %s18, 0
      %p115 = por %p113, %p114
      %p116 = scmp.ne.s32.totalorder %s108, %s110
      %p117 = scmp.eq.s32.totalorder %s23, 1
      %p118 = por %p116, %p117
      %p119 = scmp.ne.s32.totalorder %s110, %s111
      %p120 = scmp.eq.s32.totalorder %s23, 0
      %p121 = por %p119, %p120
      %p122 = scmp.ne.s32.totalorder %s110, %s111
      %p123 = scmp.eq.s32.totalorder %s24, 1
      %p124 = por %p122, %p123
      %p126 = scmp.ne.s32.totalorder %s111, %s125
      %p127 = scmp.eq.s32.totalorder %s24, 0
      %p128 = por %p126, %p127
      %s130 = sadd.s32 %s129, 1
      %p133 = scmp.eq.s32.totalorder %s18, 1
      %p134 = scmp.ne.s32.totalorder %s129, %s131
      %p135 = scmp.eq.s32.totalorder %s18, 0
      %p136 = por %p134, %p135
      %p137 = scmp.ne.s32.totalorder %s129, %s131
      %p138 = scmp.eq.s32.totalorder %s23, 1
      %p139 = por %p137, %p138
      %p140 = scmp.ne.s32.totalorder %s131, %s132
      %p141 = scmp.eq.s32.totalorder %s23, 0
      %p142 = por %p140, %p141
      %p143 = scmp.ne.s32.totalorder %s131, %s132
      %p144 = scmp.eq.s32.totalorder %s24, 1
      %p145 = por %p143, %p144
      %p147 = scmp.ne.s32.totalorder %s132, %s146
      %p148 = scmp.eq.s32.totalorder %s24, 0
      %p149 = por %p147, %p148
      %s150 = ssub.s32 %s25, %s37
      %p151 = scmp.eq.s32.totalorder %s150, 0
      %s153 = sadd.s32 %s152, 1
      %s154 = scalar_select %p151, %s152, %s153
      %p157 = pneg %p151
      %p158 = scmp.eq.s32.totalorder %s18, 1
      %p159 = por %p157, %p158
      %p160 = scmp.ne.s32.totalorder %s152, %s155
      %p161 = scmp.eq.s32.totalorder %s18, 0
      %p162 = por %p160, %p161
      %p163 = scmp.ne.s32.totalorder %s152, %s155
      %p164 = scmp.eq.s32.totalorder %s23, 1
      %p165 = por %p163, %p164
      %p166 = scmp.ne.s32.totalorder %s155, %s156
      %p167 = scmp.eq.s32.totalorder %s23, 0
      %p168 = por %p166, %p167
      %p169 = scmp.ne.s32.totalorder %s155, %s156
      %p170 = scmp.eq.s32.totalorder %s24, 1
      %p171 = por %p169, %p170
      %p173 = scmp.ne.s32.totalorder %s156, %s172
      %p174 = scmp.eq.s32.totalorder %s24, 0
      %p175 = por %p173, %p174
      %p176 = scmp.le.s32.totalorder 1, %s18
      %p177 = scmp.lt.s32.totalorder %s18, 3
      %p178 = pnand %p176, %p177
      %p179 = pneg %p178
      // Predicated region
      $region9: #{food11k_pca_classifier.1} parent=5 // pred_check
        _
      $region10: #{food11k_pca_classifier.1} parent=5 // pred_check_branch
        %181 = sbr.rel (%p178) target = $region12
      $region11: #{food11k_pca_classifier.1} parent=5 // pred_region
        %s182 = ssub.s32 %s18, 1
        // Predicated region
        $region13: #{food11k_pca_classifier.1} parent=11 // pred_check
          %p183 = pneg %p79
        $region14: #{food11k_pca_classifier.1} parent=11 // pred_check_branch
          %185 = sbr.rel (%p183) target = $region16
        $region15: #{food11k_pca_classifier.1} parent=11 // pred_region
          %s187 = ssub.s32 4096, 4096
          %188 = vsyncadd [#allocation7], %s187
          %s189 = sshll.u32 [#allocation6], 4
          %s190 = int_to_ptr.vmem [resolvable:$true] %s189
          %195 = dma.hbm_to_vmem [thread:$0]  %s1, 4096, %s190, [#allocation7], 128, 128, 8
        $region16: #{food11k_pca_classifier.1} parent=11 // pred_fallthru
          _
        // Predicated region
        $region17: #{food11k_pca_classifier.1} parent=11 // pred_check
          %p196 = pneg %p100
        $region18: #{food11k_pca_classifier.1} parent=11 // pred_check_branch
          %198 = sbr.rel (%p196) target = $region20
        $region19: #{food11k_pca_classifier.1} parent=11 // pred_region
          _
        $region20: #{food11k_pca_classifier.1} parent=11 // pred_fallthru
          _
        // Predicated region
        $region21: #{food11k_pca_classifier.1} parent=11 // pred_check
          %p199 = pneg %p121
        $region22: #{food11k_pca_classifier.1} parent=11 // pred_check_branch
          %201 = sbr.rel (%p199) target = $region24
        $region23: #{food11k_pca_classifier.1} parent=11 // pred_region
          %s203 = ssub.s32 2048, 2048
          %204 = vsyncadd [#allocation7], %s203
          %s205 = sshll.u32 [#allocation8], 4
          %s206 = int_to_ptr.vmem [resolvable:$true] %s205
          %211 = dma.hbm_to_vmem [thread:$0]  %s3, 2048, %s206, [#allocation7], 128, 128, 8
        $region24: #{food11k_pca_classifier.1} parent=11 // pred_fallthru
          _
        // Predicated region
        $region25: #{food11k_pca_classifier.1} parent=11 // pred_check
          %p212 = pneg %p142
        $region26: #{food11k_pca_classifier.1} parent=11 // pred_check_branch
          %214 = sbr.rel (%p212) target = $region28
        $region27: #{food11k_pca_classifier.1} parent=11 // pred_region
          _
        $region28: #{food11k_pca_classifier.1} parent=11 // pred_fallthru
          _
      $region12: #{food11k_pca_classifier.1} parent=5 // pred_fallthru
        _
      %p215 = scmp.lt.s32.totalorder %s18, 2
      // Predicated region
      $region29: #{food11k_pca_classifier.1} parent=5 // pred_check
        %p216 = pneg %p215
      $region30: #{food11k_pca_classifier.1} parent=5 // pred_check_branch
        %218 = sbr.rel (%p216) target = $region32
      $region31: #{food11k_pca_classifier.1} parent=5 // pred_region
        // Predicated region
        $region33: #{food11k_pca_classifier.1} parent=31 // pred_check
          %p219 = pneg %p52
        $region34: #{food11k_pca_classifier.1} parent=31 // pred_check_branch
          %221 = sbr.rel (%p219) target = $region36
        $region35: #{food11k_pca_classifier.1} parent=31 // pred_region
          %s222 = sand.u32 %s42, 1
          %s223 = scalar_lea.sflag [#allocation4], %s222
          %s224 = sand.u32 %s42, 1
          %s225 = smul.addr %s224, 16
          %s226 = scalar_lea.vmem [#allocation3], %s225
          %s227 = smul.u32 2, %s26
          %s229 = ssub.s32 256, 256
          %230 = vsyncadd %s223, %s229
          %s231 = smul.addr %s25, 2
          %s232 = sadd.s32 %s227, %s231
          %s233 = smul.addr %s232, 128
          %s234 = scalar_lea.hbm %s0, %s233
          %s236 = sshll.u32 %s226, 4
          %s237 = int_to_ptr.vmem [resolvable:$true] %s236
          %239 = dma.hbm_to_vmem [thread:$0]  %s234, 256, %s237, %s223
        $region36: #{food11k_pca_classifier.1} parent=31 // pred_fallthru
          _
      $region32: #{food11k_pca_classifier.1} parent=5 // pred_fallthru
        _
      %p240 = scmp.le.s32.totalorder 1, %s18
      %p241 = scmp.lt.s32.totalorder %s18, 3
      %p242 = pnand %p240, %p241
      %p243 = pneg %p242
      // Predicated region
      $region37: #{food11k_pca_classifier.1} parent=5 // pred_check
        _
      $region38: #{food11k_pca_classifier.1} parent=5 // pred_check_branch
        %245 = sbr.rel (%p242) target = $region40
      $region39: #{food11k_pca_classifier.1} parent=5 // pred_region
        %s246 = ssub.s32 %s18, 1
        %s247 = sand.u32 %s45, 1
        %s248 = scalar_lea.sflag [#allocation4], %s247
        %s249 = sand.u32 %s45, 1
        %s250 = smul.addr %s249, 16
        %s251 = scalar_lea.vmem [#allocation3], %s250
        // Predicated region
        $region41: #{food11k_pca_classifier.1} parent=39 // pred_check
          %p252 = pneg %p58
        $region42: #{food11k_pca_classifier.1} parent=39 // pred_check_branch
          %254 = sbr.rel (%p252) target = $region44
        $region43: #{food11k_pca_classifier.1} parent=39 // pred_region
          %255 = dma.done %s248, 256
        $region44: #{food11k_pca_classifier.1} parent=39 // pred_fallthru
          _
        // Predicated region
        $region45: #{food11k_pca_classifier.1} parent=39 // pred_check
          %p256 = pneg %p79
        $region46: #{food11k_pca_classifier.1} parent=39 // pred_check_branch
          %258 = sbr.rel (%p256) target = $region48
        $region47: #{food11k_pca_classifier.1} parent=39 // pred_region
          %259 = dma.done [#allocation7], 4096
        $region48: #{food11k_pca_classifier.1} parent=39 // pred_fallthru
          _
        // Predicated region
        $region49: #{food11k_pca_classifier.1} parent=39 // pred_check
          %p260 = pneg %p121
        $region50: #{food11k_pca_classifier.1} parent=39 // pred_check_branch
          %262 = sbr.rel (%p260) target = $region52
        $region51: #{food11k_pca_classifier.1} parent=39 // pred_region
          %263 = dma.done [#allocation7], 2048
        $region52: #{food11k_pca_classifier.1} parent=39 // pred_fallthru
          _
        %s264 = sand.u32 %s45, 1
        %s265 = scalar_lea.sflag [#allocation4], %s264
        %s266 = sand.u32 %s45, 1
        %s267 = smul.addr %s266, 16
        %s268 = scalar_lea.vmem [#allocation3], %s267
        %p269 = pneg %p58
        %p270 = pneg %p55
        %p271 = pneg %p79
        %p272 = pneg %p76
        %p273 = pneg %p100
        %p274 = pneg %p97
        %p275 = pneg %p121
        %p276 = pneg %p118
        %p277 = pneg %p142
        %p278 = pneg %p139
        %p279 = pneg %p168
        %p280 = pneg %p165
        %s281 = sand.u32 %s155, 1
        %s282 = scalar_lea.sflag [#allocation5], %s281
        %s283 = sand.u32 %s155, 1
        %s284 = smul.addr %s283, 8
        %s285 = scalar_lea.vmem [#allocation9], %s284
        %s286 = smul.u32 2, %s28
        %p287 = scmp.eq.s32.totalorder %s28, 0
        // Predicated region
        $region53: #{food11k_pca_classifier.1} parent=39 // pred_check
          %p288 = pneg %p287
        $region54: #{food11k_pca_classifier.1} parent=39 // pred_check_branch
          %290 = sbr.rel (%p288) target = $region56
        $region55: #{food11k_pca_classifier.1} parent=39 // pred_region
          %291 = vst [vmem:[#allocation2] sm:$0xff] 0.0
        $region56: #{food11k_pca_classifier.1} parent=39 // pred_fallthru
          _
        %v292 = vld [vmem:[#allocation2] sm:$0xff]
        %v293 = vld [vmem:[%s251] sm:$0xff]
        %v294 = vld [vmem:[%s251 + $0x8] sm:$0xff]
        %v295 = vld [vmem:[#allocation6] sm:$0xff]
        %v296 = vld [vmem:[#allocation6 + $0x8] sm:$0xff]
        %v297 = vld [vmem:[#allocation6 + $0x10] sm:$0xff]
        %v298 = vld [vmem:[#allocation6 + $0x18] sm:$0xff]
        %v299 = vld [vmem:[#allocation6 + $0x20] sm:$0xff]
        %v300 = vld [vmem:[#allocation6 + $0x28] sm:$0xff]
        %v301 = vld [vmem:[#allocation6 + $0x30] sm:$0xff]
        %v302 = vld [vmem:[#allocation6 + $0x38] sm:$0xff]
        %v303 = vld [vmem:[#allocation6 + $0x40] sm:$0xff]
        %v304 = vld [vmem:[#allocation6 + $0x48] sm:$0xff]
        %v305 = vld [vmem:[#allocation6 + $0x50] sm:$0xff]
        %v306 = vld [vmem:[#allocation6 + $0x58] sm:$0xff]
        %v307 = vld [vmem:[#allocation6 + $0x60] sm:$0xff]
        %v308 = vld [vmem:[#allocation6 + $0x68] sm:$0xff]
        %v309 = vld [vmem:[#allocation6 + $0x70] sm:$0xff]
        %v310 = vld [vmem:[#allocation6 + $0x78] sm:$0xff]
        %v311 = vld [vmem:[#allocation6 + $0x80] sm:$0xff]
        %v312 = vld [vmem:[#allocation6 + $0x88] sm:$0xff]
        %v313 = vld [vmem:[#allocation6 + $0x90] sm:$0xff]
        %v314 = vld [vmem:[#allocation6 + $0x98] sm:$0xff]
        %v315 = vld [vmem:[#allocation6 + $0xa0] sm:$0xff]
        %v316 = vld [vmem:[#allocation6 + $0xa8] sm:$0xff]
        %v317 = vld [vmem:[#allocation6 + $0xb0] sm:$0xff]
        %v318 = vld [vmem:[#allocation6 + $0xb8] sm:$0xff]
        %v319 = vld [vmem:[#allocation6 + $0xc0] sm:$0xff]
        %v320 = vld [vmem:[#allocation6 + $0xc8] sm:$0xff]
        %v321 = vld [vmem:[#allocation6 + $0xd0] sm:$0xff]
        %v322 = vld [vmem:[#allocation6 + $0xd8] sm:$0xff]
        %v323 = vld [vmem:[#allocation6 + $0xe0] sm:$0xff]
        %v324 = vld [vmem:[#allocation6 + $0xe8] sm:$0xff]
        %v325 = vld [vmem:[#allocation6 + $0xf0] sm:$0xff]
        %v326 = vld [vmem:[#allocation6 + $0xf8] sm:$0xff]
        %327 = vmatprep.subr.mxu0 0.0
        %328 = vmatpush1.msra.mxu0 %v295
        %329 = vmatprep.subr.mxu0 0.0
        %330 = vmatpush1.msra.mxu0 %v296
        %331 = vmatprep.subr.mxu0 0.0
        %332 = vmatpush1.msra.mxu0 %v297
        %333 = vmatprep.subr.mxu0 0.0
        %334 = vmatpush1.msra.mxu0 %v298
        %335 = vmatprep.subr.mxu0 0.0
        %336 = vmatpush1.msra.mxu0 %v299
        %337 = vmatprep.subr.mxu0 0.0
        %338 = vmatpush1.msra.mxu0 %v300
        %339 = vmatprep.subr.mxu0 0.0
        %340 = vmatpush1.msra.mxu0 %v301
        %341 = vmatprep.subr.mxu0 0.0
        %342 = vmatpush1.msra.mxu0 %v302
        %343 = vmatprep.subr.mxu0 0.0
        %344 = vmatpush1.msra.mxu0 %v303
        %345 = vmatprep.subr.mxu0 0.0
        %346 = vmatpush1.msra.mxu0 %v304
        %347 = vmatprep.subr.mxu0 0.0
        %348 = vmatpush1.msra.mxu0 %v305
        %349 = vmatprep.subr.mxu0 0.0
        %350 = vmatpush1.msra.mxu0 %v306
        %351 = vmatprep.subr.mxu0 0.0
        %352 = vmatpush1.msra.mxu0 %v307
        %353 = vmatprep.subr.mxu0 0.0
        %354 = vmatpush1.msra.mxu0 %v308
        %355 = vmatprep.subr.mxu0 0.0
        %356 = vmatpush1.msra.mxu0 %v309
        %357 = vmatprep.subr.mxu0 0.0
        %358 = vmatpush1.msra.mxu0 %v310
        %359 = vmatprep.subr.mxu0 0.0
        %360 = vmatpush1.msra.mxu0 %v311
        %361 = vmatprep.subr.mxu0 0.0
        %362 = vmatpush1.msra.mxu0 %v312
        %363 = vmatprep.subr.mxu0 0.0
        %364 = vmatpush1.msra.mxu0 %v313
        %365 = vmatprep.subr.mxu0 0.0
        %366 = vmatpush1.msra.mxu0 %v314
        %367 = vmatprep.subr.mxu0 0.0
        %368 = vmatpush1.msra.mxu0 %v315
        %369 = vmatprep.subr.mxu0 0.0
        %370 = vmatpush1.msra.mxu0 %v316
        %371 = vmatprep.subr.mxu0 0.0
        %372 = vmatpush1.msra.mxu0 %v317
        %373 = vmatprep.subr.mxu0 0.0
        %374 = vmatpush1.msra.mxu0 %v318
        %375 = vmatprep.subr.mxu0 0.0
        %376 = vmatpush1.msra.mxu0 %v319
        %377 = vmatprep.subr.mxu0 0.0
        %378 = vmatpush1.msra.mxu0 %v320
        %379 = vmatprep.subr.mxu0 0.0
        %380 = vmatpush1.msra.mxu0 %v321
        %381 = vmatprep.subr.mxu0 0.0
        %382 = vmatpush1.msra.mxu0 %v322
        %383 = vmatprep.subr.mxu0 0.0
        %384 = vmatpush1.msra.mxu0 %v323
        %385 = vmatprep.subr.mxu0 0.0
        %386 = vmatpush1.msra.mxu0 %v324
        %387 = vmatprep.subr.mxu0 0.0
        %388 = vmatpush1.msra.mxu0 %v325
        %389 = vmatprep.subr.mxu0 0.0
        %390 = vmatpush1.msra.mxu0 %v326
        %391 = vmatprep.mubr.f32.mxu0 %v294
        %392 = vmatmul.mubr.f32.gmra.mrb[0].mxu0 %v293
        %v393 = vpop.f32.mrb[0].mxu0
        %v394 = vadd.f32 0.0, %v393
        %v395 = vpop.f32.mrb[0].mxu0
        %396 = vdwg.mxu0
        %v397 = vadd.f32 %v292, %v394
        %398 = vst [vmem:[#allocation2] sm:$0xff] %v397
        // Predicated region
        $region57: #{food11k_pca_classifier.1} parent=39 // pred_check
          %p399 = pneg %p287
        $region58: #{food11k_pca_classifier.1} parent=39 // pred_check_branch
          %401 = sbr.rel (%p399) target = $region60
        $region59: #{food11k_pca_classifier.1} parent=39 // pred_region
          %v402 = vld [vmem:[#allocation2] sm:$0xff]
          %v403 = vld [vmem:[%s2] sm:$0x1]
          %v405 = vlaneseq
          %v406 = vshrl.u32 %v405, 7
          %v407 = vsub.s32 0, %v406
          %v408 = vrot.slane %v403, %v407
          %v410 = vadd.f32 %v402, %v408
          %v411 = vmax.f32 %v410, 0.0
          %v412 = vld [vmem:[#allocation8] sm:$0xff]
          %v413 = vld [vmem:[#allocation8 + $0x8] sm:$0xff]
          %v414 = vld [vmem:[#allocation8 + $0x10] sm:$0xff]
          %v415 = vld [vmem:[#allocation8 + $0x18] sm:$0xff]
          %v416 = vld [vmem:[#allocation8 + $0x20] sm:$0xff]
          %v417 = vld [vmem:[#allocation8 + $0x28] sm:$0xff]
          %v418 = vld [vmem:[#allocation8 + $0x30] sm:$0xff]
          %v419 = vld [vmem:[#allocation8 + $0x38] sm:$0xff]
          %v420 = vld [vmem:[#allocation8 + $0x40] sm:$0xff]
          %v421 = vld [vmem:[#allocation8 + $0x48] sm:$0xff]
          %v422 = vld [vmem:[#allocation8 + $0x50] sm:$0xff]
          %v423 = vld [vmem:[#allocation8 + $0x58] sm:$0xff]
          %v424 = vld [vmem:[#allocation8 + $0x60] sm:$0xff]
          %v425 = vld [vmem:[#allocation8 + $0x68] sm:$0xff]
          %v426 = vld [vmem:[#allocation8 + $0x70] sm:$0xff]
          %v427 = vld [vmem:[#allocation8 + $0x78] sm:$0xff]
          %v428 = vld [vmem:[%s4] sm:$0x1]
          %v430 = vlaneseq
          %v431 = vshrl.u32 %v430, 7
          %v432 = vsub.s32 0, %v431
          %v433 = vrot.slane %v428, %v432
          %435 = vmatprep.subr.mxu0 0.0
          %436 = vmatpush1.msra.mxu0 %v412
          %437 = vmatprep.subr.mxu0 0.0
          %438 = vmatpush1.msra.mxu0 %v413
          %439 = vmatprep.subr.mxu0 0.0
          %440 = vmatpush1.msra.mxu0 %v414
          %441 = vmatprep.subr.mxu0 0.0
          %442 = vmatpush1.msra.mxu0 %v415
          %443 = vmatprep.subr.mxu0 0.0
          %444 = vmatpush1.msra.mxu0 %v416
          %445 = vmatprep.subr.mxu0 0.0
          %446 = vmatpush1.msra.mxu0 %v417
          %447 = vmatprep.subr.mxu0 0.0
          %448 = vmatpush1.msra.mxu0 %v418
          %449 = vmatprep.subr.mxu0 0.0
          %450 = vmatpush1.msra.mxu0 %v419
          %451 = vmatprep.subr.mxu0 0.0
          %452 = vmatpush1.msra.mxu0 %v420
          %453 = vmatprep.subr.mxu0 0.0
          %454 = vmatpush1.msra.mxu0 %v421
          %455 = vmatprep.subr.mxu0 0.0
          %456 = vmatpush1.msra.mxu0 %v422
          %457 = vmatprep.subr.mxu0 0.0
          %458 = vmatpush1.msra.mxu0 %v423
          %459 = vmatprep.subr.mxu0 0.0
          %460 = vmatpush1.msra.mxu0 %v424
          %461 = vmatprep.subr.mxu0 0.0
          %462 = vmatpush1.msra.mxu0 %v425
          %463 = vmatprep.subr.mxu0 0.0
          %464 = vmatpush1.msra.mxu0 %v426
          %465 = vmatprep.subr.mxu0 0.0
          %466 = vmatpush1.msra.mxu0 %v427
          %467 = vmatprep.subr.mxu0 0.0
          %468 = vmatpush1.msra.mxu0 0.0
          %469 = vmatprep.subr.mxu0 0.0
          %470 = vmatpush1.msra.mxu0 0.0
          %471 = vmatprep.subr.mxu0 0.0
          %472 = vmatpush1.msra.mxu0 0.0
          %473 = vmatprep.subr.mxu0 0.0
          %474 = vmatpush1.msra.mxu0 0.0
          %475 = vmatprep.subr.mxu0 0.0
          %476 = vmatpush1.msra.mxu0 0.0
          %477 = vmatprep.subr.mxu0 0.0
          %478 = vmatpush1.msra.mxu0 0.0
          %479 = vmatprep.subr.mxu0 0.0
          %480 = vmatpush1.msra.mxu0 0.0
          %481 = vmatprep.subr.mxu0 0.0
          %482 = vmatpush1.msra.mxu0 0.0
          %483 = vmatprep.subr.mxu0 0.0
          %484 = vmatpush1.msra.mxu0 0.0
          %485 = vmatprep.subr.mxu0 0.0
          %486 = vmatpush1.msra.mxu0 0.0
          %487 = vmatprep.subr.mxu0 0.0
          %488 = vmatpush1.msra.mxu0 0.0
          %489 = vmatprep.subr.mxu0 0.0
          %490 = vmatpush1.msra.mxu0 0.0
          %491 = vmatprep.subr.mxu0 0.0
          %492 = vmatpush1.msra.mxu0 0.0
          %493 = vmatprep.subr.mxu0 0.0
          %494 = vmatpush1.msra.mxu0 0.0
          %495 = vmatprep.subr.mxu0 0.0
          %496 = vmatpush1.msra.mxu0 0.0
          %497 = vmatprep.subr.mxu0 0.0
          %498 = vmatpush1.msra.mxu0 0.0
          %499 = vmatprep.mubr.f32.mxu0 0.0
          %500 = vmatmul.mubr.f32.gmra.mrb[0].mxu0 %v411
          %v501 = vpop.f32.mrb[0].mxu0
          %v502 = vadd.f32 %v433, %v501
          %v503 = vpop.f32.mrb[0].mxu0
          %504 = vdwg.mxu0
          %505 = vmax.xlane.f32.xlu0 %v502
          %v506 = vpop.xlane.xlu0 %505
          %v507 = vsub.f32 %v502, %v506
          %v508 = vmul.f32 %v507, 1.442695
          %v509 = vpow.pop %v508
          %510 = vadd.xlane.f32.xlu0 %v509
          %v511 = vpop.xlane.xlu0 %510
          %v512 = vrcp.pop %v511
          %v513 = vmul.f32 %v509, %v512
          %514 = vst [vmem:[%s285] sm:$0xff] %v513
        $region60: #{food11k_pca_classifier.1} parent=39 // pred_fallthru
          _
        %s515 = sand.u32 %s155, 1
        %s516 = scalar_lea.sflag [#allocation5], %s515
        %s517 = sand.u32 %s155, 1
        %s518 = smul.addr %s517, 8
        %s519 = scalar_lea.vmem [#allocation9], %s518
        // Predicated region
        $region61: #{food11k_pca_classifier.1} parent=39 // pred_check
          %p520 = pneg %p165
        $region62: #{food11k_pca_classifier.1} parent=39 // pred_check_branch
          %522 = sbr.rel (%p520) target = $region64
        $region63: #{food11k_pca_classifier.1} parent=39 // pred_region
          %s524 = ssub.s32 128, 128
          %525 = vsyncadd %s516, %s524
          %s526 = smul.addr %s27, 128
          %s527 = scalar_lea.hbm %s5, %s526
          %s529 = sshll.u32 %s519, 4
          %s530 = int_to_ptr.vmem [resolvable:$true] %s529
          %532 = dma.vmem_to_hbm [thread:$0]  %s530, 128, %s527, %s516
        $region64: #{food11k_pca_classifier.1} parent=39 // pred_fallthru
          _
      $region40: #{food11k_pca_classifier.1} parent=5 // pred_fallthru
        _
      %p533 = scmp.le.s32.totalorder 2, %s18
      // Predicated region
      $region65: #{food11k_pca_classifier.1} parent=5 // pred_check
        %p534 = pneg %p533
      $region66: #{food11k_pca_classifier.1} parent=5 // pred_check_branch
        %536 = sbr.rel (%p534) target = $region68
      $region67: #{food11k_pca_classifier.1} parent=5 // pred_region
        %s537 = ssub.s32 %s18, 2
        // Predicated region
        $region69: #{food11k_pca_classifier.1} parent=67 // pred_check
          %p538 = pneg %p171
        $region70: #{food11k_pca_classifier.1} parent=67 // pred_check_branch
          %540 = sbr.rel (%p538) target = $region72
        $region71: #{food11k_pca_classifier.1} parent=67 // pred_region
          %s541 = sand.u32 %s156, 1
          %s542 = scalar_lea.sflag [#allocation5], %s541
          %s543 = sand.u32 %s156, 1
          %s544 = smul.addr %s543, 8
          %s545 = scalar_lea.vmem [#allocation9], %s544
          %546 = dma.done %s542, 128
        $region72: #{food11k_pca_classifier.1} parent=67 // pred_fallthru
          _
      $region68: #{food11k_pca_classifier.1} parent=5 // pred_fallthru
        _
    $region6: #{food11k_pca_classifier.1} parent=1 // loop_footer
      %s22 = sadd.s32 1, %s18
    $region7: #{food11k_pca_classifier.1} parent=1 // loop_footer_branch
      %17 = sbr.rel target = $region3
    $region8: #{food11k_pca_classifier.1} parent=1 // loop_exit
      _
    %547 = vsyncpa [#allocation4], 1
    %s548 = scalar_lea.sflag [#allocation4], 1
    %549 = vsyncpa %s548, 1
    %550 = vsyncpa [#allocation7], 1
    %551 = vsyncpa [#allocation5], 1
    %s552 = scalar_lea.sflag [#allocation5], 1
    %553 = vsyncpa %s552, 1

</llo_original>
